<compile_context>
chip_gen: v7x
topology: tpu7x:2x2x1
jax: 0.10.0
libtpu: 0.0.40
codegen_flags: <defaults>
</compile_context>

<pallas_src>
import functools

import jax
import jax.numpy as jnp
from jax.experimental import pallas as pl
from jax.experimental.pallas import tpu as pltpu


def _round_up(x, m):
    return ((x + m - 1) // m) * m


def mlp_kernel(x_ref,
               w0_ref, b0_ref,
               w1_ref, b1_ref,
               w2_ref, b2_ref,
               w3_ref, b3_ref,
               o_ref, *, valid_out):
    """Fused forward for one batch tile: 4x (bf16 matmul + f32 bias) with
    ReLU / Tanh / Sigmoid / masked Softmax (last layer padded to 128 lanes)."""
    f32 = jnp.float32
    bf16 = jnp.bfloat16

    h = x_ref[...]  # f32 (TB, D_in)

    # Layer 0: Linear + ReLU (VPU max)
    h = jnp.dot(h.astype(bf16), w0_ref[...], preferred_element_type=f32) + b0_ref[...]
    h = jnp.maximum(h, 0.0)

    # Layer 1: Linear + Tanh (EUP)
    h = jnp.dot(h.astype(bf16), w1_ref[...], preferred_element_type=f32) + b1_ref[...]
    h = jnp.tanh(h)

    # Layer 2: Linear + Sigmoid (exp + reciprocal both on the EUP slot)
    h = jnp.dot(h.astype(bf16), w2_ref[...], preferred_element_type=f32) + b2_ref[...]
    h = pl.reciprocal(1.0 + jnp.exp(-h), approx=True)

    # Layer 3: Linear (output padded to 128 lanes) + Softmax over the real
    # `valid_out` columns.  Padded columns are masked to -inf so they get
    # exactly zero probability; the wrapper slices them off.
    h = jnp.dot(h.astype(bf16), w3_ref[...], preferred_element_type=f32) + b3_ref[...]
    if valid_out < h.shape[-1]:
        col = jax.lax.broadcasted_iota(jnp.int32, h.shape, dimension=1)
        h = jnp.where(col < valid_out, h, -jnp.inf)
    m = jnp.max(h, axis=-1, keepdims=True)
    e = jnp.exp(h - m)
    inv = pl.reciprocal(jnp.sum(e, axis=-1, keepdims=True), approx=True)
    o_ref[...] = (e * inv).astype(o_ref.dtype)


def keras2torch_forward(x, params, *, tb=256):
    """Fused MLP forward via a single batch-gridded Pallas kernel.

    x:      [B, D_in] float32
    params: list of (W [in, out] f32, b [1, out] f32) pairs, length 4
    Returns [B, D_out] float32 (softmax over the last axis).
    """
    B, d_in = x.shape
    out_dim = params[-1][0].shape[1]
    out_pad = _round_up(out_dim, 128)          # lane-dense output width

    # bf16 MXU operands for the weights; biases stay f32 (added post-accumulate).
    ws = [w.astype(jnp.bfloat16) for (w, _) in params]
    bs = [b.astype(jnp.float32).reshape(1, -1) for (_, b) in params]

    # Zero-pad the last layer to a multiple of 128 output lanes.
    if out_pad != out_dim:
        ws[-1] = jnp.pad(ws[-1], ((0, 0), (0, out_pad - out_dim)))
        bs[-1] = jnp.pad(bs[-1], ((0, 0), (0, out_pad - out_dim)))

    # Batch tiling: TB multiple of 8 (MXU-friendly 256 for large batches),
    # batch padded host-side to a whole number of tiles.
    tb = min(tb, _round_up(B, 8))
    b_pad = _round_up(B, tb)
    if b_pad != B:
        x = jnp.pad(x, ((0, b_pad - B), (0, 0)))
    grid = (b_pad // tb,)

    flat_params = []
    for w, b in zip(ws, bs):
        flat_params.extend([w, b])

    # Weights/biases: full-array blocks pinned at (0, 0) -> DMA'd once, resident.
    param_specs = [pl.BlockSpec(p.shape, lambda i: (0, 0)) for p in flat_params]

    # Advisory cost estimate.
    dims = [d_in] + [w.shape[1] for w in ws]
    flops = int(2 * b_pad * sum(a * b for a, b in zip(dims[:-1], dims[1:])))
    transcendentals = int(b_pad * (dims[2] + dims[3] + dims[4] + dims[4] // 4))
    bytes_accessed = int(
        b_pad * d_in * 4 + b_pad * out_pad * 4
        + sum(p.size * p.dtype.itemsize for p in flat_params))

    out = pl.pallas_call(
        functools.partial(mlp_kernel, valid_out=out_dim),
        out_shape=jax.ShapeDtypeStruct((b_pad, out_pad), jnp.float32),
        grid=grid,
        in_specs=[pl.BlockSpec((tb, d_in), lambda i: (i, 0))] + param_specs,
        out_specs=pl.BlockSpec((tb, out_pad), lambda i: (i, 0)),
        compiler_params=pltpu.CompilerParams(
            dimension_semantics=("parallel",),
            vmem_limit_bytes=32 * 1024 * 1024),
        cost_estimate=pl.CostEstimate(
            flops=flops,
            transcendentals=transcendentals,
            bytes_accessed=bytes_accessed),
    )(x, *flat_params)

    return out[:B, :out_dim]


def _init_params(key, dims):
    """Deterministic parameter init; dims = [d0, d1, ..., dn]."""
    params = []
    for i in range(len(dims) - 1):
        key, kw, kb = jax.random.split(key, 3)
        fan_in = dims[i]
        bound = 1.0 / jnp.sqrt(fan_in)
        w = jax.random.uniform(kw, (dims[i], dims[i + 1]),
                               minval=-bound, maxval=bound, dtype=jnp.float32)
        b = jax.random.uniform(kb, (1, dims[i + 1]),
                               minval=-bound, maxval=bound, dtype=jnp.float32)
        params.append((w, b))
    return params


def _reference_forward(x, params):
    """Plain-JAX f32 reference matching the PyTorch forward semantics."""
    acts = [jax.nn.relu, jnp.tanh, jax.nn.sigmoid,
            lambda h: jax.nn.softmax(h, axis=-1)]
    h = x
    for (w, b), act in zip(params, acts):
        h = act(h @ w + b)
    return h


if __name__ == "__main__":
    key = jax.random.PRNGKey(0)
    kx, kp = jax.random.split(key)

    B = 8
    dims = [32, 64, 64, 32, 16]

    x = jax.random.normal(kx, (B, dims[0]), dtype=jnp.float32)
    params = _init_params(kp, dims)

    out = keras2torch_forward(x, params)
    out = jax.block_until_ready(out)

    ref = _reference_forward(x, params)
    assert out.shape == (B, dims[-1]), f"bad shape {out.shape}"
    # bf16 MXU operands + approx EUP reciprocals => compare to the f32
    # reference with a correspondingly relaxed tolerance.
    assert jnp.allclose(out, ref, atol=2e-2, rtol=2e-2), "mismatch vs reference"
    # Rows must still be valid probability distributions over the 16 classes.
    assert jnp.allclose(jnp.sum(out, axis=-1), 1.0, atol=1e-2), "softmax rows != 1"

    print("KERNEL_OK")
</pallas_src>

<mosaic_0001>
module attributes {stable_mosaic.version = 11 : i64} {
  func.func @mlp_kernel(%arg0: i32, %arg1: memref<8x32xf32, #tpu.memory_space<vmem>>, %arg2: memref<32x64xbf16, #tpu.memory_space<vmem>>, %arg3: memref<1x64xf32, #tpu.memory_space<vmem>>, %arg4: memref<64x64xbf16, #tpu.memory_space<vmem>>, %arg5: memref<1x64xf32, #tpu.memory_space<vmem>>, %arg6: memref<64x32xbf16, #tpu.memory_space<vmem>>, %arg7: memref<1x32xf32, #tpu.memory_space<vmem>>, %arg8: memref<32x128xbf16, #tpu.memory_space<vmem>>, %arg9: memref<1x128xf32, #tpu.memory_space<vmem>>, %arg10: memref<8x128xf32, #tpu.memory_space<vmem>>) attributes {dimension_semantics = [#tpu.dimension_semantics<parallel>], iteration_bounds = array<i64: 1>, scalar_prefetch = 0 : i64, scratch_operands = 0 : i64, tpu.core_type = #tpu.core_type<tc>, window_params = [{transform_indices = @transform_0, window_bounds = array<i64: 8, 32>}, {pipeline_mode = #tpu.pipeline_mode<synchronous>, transform_indices = @transform_1, window_bounds = array<i64: 32, 64>}, {pipeline_mode = #tpu.pipeline_mode<synchronous>, transform_indices = @transform_2, window_bounds = array<i64: 1, 64>}, {pipeline_mode = #tpu.pipeline_mode<synchronous>, transform_indices = @transform_3, window_bounds = array<i64: 64, 64>}, {pipeline_mode = #tpu.pipeline_mode<synchronous>, transform_indices = @transform_4, window_bounds = array<i64: 1, 64>}, {pipeline_mode = #tpu.pipeline_mode<synchronous>, transform_indices = @transform_5, window_bounds = array<i64: 64, 32>}, {pipeline_mode = #tpu.pipeline_mode<synchronous>, transform_indices = @transform_6, window_bounds = array<i64: 1, 32>}, {pipeline_mode = #tpu.pipeline_mode<synchronous>, transform_indices = @transform_7, window_bounds = array<i64: 32, 128>}, {pipeline_mode = #tpu.pipeline_mode<synchronous>, transform_indices = @transform_8, window_bounds = array<i64: 1, 128>}, {transform_indices = @transform_9, window_bounds = array<i64: 8, 128>}]} {
    %c0 = arith.constant 0 : index
    %c0_0 = arith.constant 0 : index
    %0 = vector.load %arg1[%c0, %c0_0] : memref<8x32xf32, #tpu.memory_space<vmem>>, vector<8x32xf32>
    %1 = arith.truncf %0 : vector<8x32xf32> to vector<8x32xbf16>
    %c0_1 = arith.constant 0 : index
    %c0_2 = arith.constant 0 : index
    %2 = vector.load %arg2[%c0_1, %c0_2] : memref<32x64xbf16, #tpu.memory_space<vmem>>, vector<32x64xbf16>
    %cst = arith.constant dense<0.000000e+00> : vector<8x64xf32>
    %3 = tpu.matmul %1, %2, %cst {dimension_numbers = #tpu.dot_dimension_numbers<[1], [0], [0], [1], [0, 0, 1, 1], [], []>} : vector<8x32xbf16>, vector<32x64xbf16>, vector<8x64xf32> -> vector<8x64xf32>
    %c0_3 = arith.constant 0 : index
    %c0_4 = arith.constant 0 : index
    %4 = vector.load %arg3[%c0_3, %c0_4] : memref<1x64xf32, #tpu.memory_space<vmem>>, vector<1x64xf32>
    %5 = vector.broadcast %4 : vector<1x64xf32> to vector<8x64xf32>
    %6 = arith.addf %3, %5 : vector<8x64xf32>
    %cst_5 = arith.constant 0.000000e+00 : f32
    %7 = vector.broadcast %cst_5 : f32 to vector<8x64xf32>
    %8 = arith.maximumf %6, %7 : vector<8x64xf32>
    %9 = arith.truncf %8 : vector<8x64xf32> to vector<8x64xbf16>
    %c0_6 = arith.constant 0 : index
    %c0_7 = arith.constant 0 : index
    %10 = vector.load %arg4[%c0_6, %c0_7] : memref<64x64xbf16, #tpu.memory_space<vmem>>, vector<64x64xbf16>
    %cst_8 = arith.constant dense<0.000000e+00> : vector<8x64xf32>
    %11 = tpu.matmul %9, %10, %cst_8 {dimension_numbers = #tpu.dot_dimension_numbers<[1], [0], [0], [1], [0, 0, 1, 1], [], []>} : vector<8x64xbf16>, vector<64x64xbf16>, vector<8x64xf32> -> vector<8x64xf32>
    %c0_9 = arith.constant 0 : index
    %c0_10 = arith.constant 0 : index
    %12 = vector.load %arg5[%c0_9, %c0_10] : memref<1x64xf32, #tpu.memory_space<vmem>>, vector<1x64xf32>
    %13 = vector.broadcast %12 : vector<1x64xf32> to vector<8x64xf32>
    %14 = arith.addf %11, %13 : vector<8x64xf32>
    %15 = math.tanh %14 : vector<8x64xf32>
    %16 = arith.truncf %15 : vector<8x64xf32> to vector<8x64xbf16>
    %c0_11 = arith.constant 0 : index
    %c0_12 = arith.constant 0 : index
    %17 = vector.load %arg6[%c0_11, %c0_12] : memref<64x32xbf16, #tpu.memory_space<vmem>>, vector<64x32xbf16>
    %cst_13 = arith.constant dense<0.000000e+00> : vector<8x32xf32>
    %18 = tpu.matmul %16, %17, %cst_13 {dimension_numbers = #tpu.dot_dimension_numbers<[1], [0], [0], [1], [0, 0, 1, 1], [], []>} : vector<8x64xbf16>, vector<64x32xbf16>, vector<8x32xf32> -> vector<8x32xf32>
    %c0_14 = arith.constant 0 : index
    %c0_15 = arith.constant 0 : index
    %19 = vector.load %arg7[%c0_14, %c0_15] : memref<1x32xf32, #tpu.memory_space<vmem>>, vector<1x32xf32>
    %20 = vector.broadcast %19 : vector<1x32xf32> to vector<8x32xf32>
    %21 = arith.addf %18, %20 : vector<8x32xf32>
    %cst_16 = arith.constant 0.000000e+00 : f32
    %22 = vector.broadcast %cst_16 : f32 to vector<8x32xf32>
    %23 = arith.subf %22, %21 : vector<8x32xf32>
    %24 = math.exp %23 : vector<8x32xf32>
    %cst_17 = arith.constant 1.000000e+00 : f32
    %25 = vector.broadcast %cst_17 : f32 to vector<8x32xf32>
    %26 = arith.addf %25, %24 : vector<8x32xf32>
    %27 = tpu.reciprocal %26 {approx = true} : vector<8x32xf32> -> vector<8x32xf32>
    %28 = arith.truncf %27 : vector<8x32xf32> to vector<8x32xbf16>
    %c0_18 = arith.constant 0 : index
    %c0_19 = arith.constant 0 : index
    %29 = vector.load %arg8[%c0_18, %c0_19] : memref<32x128xbf16, #tpu.memory_space<vmem>>, vector<32x128xbf16>
    %cst_20 = arith.constant dense<0.000000e+00> : vector<8x128xf32>
    %30 = tpu.matmul %28, %29, %cst_20 {dimension_numbers = #tpu.dot_dimension_numbers<[1], [0], [0], [1], [0, 0, 1, 1], [], []>} : vector<8x32xbf16>, vector<32x128xbf16>, vector<8x128xf32> -> vector<8x128xf32>
    %c0_21 = arith.constant 0 : index
    %c0_22 = arith.constant 0 : index
    %31 = vector.load %arg9[%c0_21, %c0_22] : memref<1x128xf32, #tpu.memory_space<vmem>>, vector<1x128xf32>
    %32 = vector.broadcast %31 : vector<1x128xf32> to vector<8x128xf32>
    %33 = arith.addf %30, %32 : vector<8x128xf32>
    %34 = tpu.iota {dimensions = array<i32: 1>} : vector<8x128xi32>
    %c16_i32 = arith.constant 16 : i32
    %35 = vector.broadcast %c16_i32 : i32 to vector<8x128xi32>
    %36 = arith.cmpi slt, %34, %35 : vector<8x128xi32>
    %cst_23 = arith.constant 0xFF800000 : f32
    %37 = vector.broadcast %cst_23 : f32 to vector<8x128xf32>
    %38 = arith.select %36, %33, %37 : vector<8x128xi1>, vector<8x128xf32>
    %cst_24 = arith.constant dense<0xFF800000> : vector<8xf32>
    %39 = vector.multi_reduction <maximumf>, %38, %cst_24 [1] : vector<8x128xf32> to vector<8xf32>
    %40 = vector.shape_cast %39 : vector<8xf32> to vector<8x1xf32>
    %41 = vector.broadcast %40 : vector<8x1xf32> to vector<8x128xf32>
    %42 = arith.subf %38, %41 : vector<8x128xf32>
    %43 = math.exp %42 : vector<8x128xf32>
    %cst_25 = arith.constant dense<0.000000e+00> : vector<8xf32>
    %44 = vector.multi_reduction <add>, %43, %cst_25 [1] : vector<8x128xf32> to vector<8xf32>
    %45 = vector.shape_cast %44 : vector<8xf32> to vector<8x1xf32>
    %46 = tpu.reciprocal %45 {approx = true} : vector<8x1xf32> -> vector<8x1xf32>
    %47 = vector.broadcast %46 : vector<8x1xf32> to vector<8x128xf32>
    %48 = arith.mulf %43, %47 : vector<8x128xf32>
    %c0_26 = arith.constant 0 : index
    %c0_27 = arith.constant 0 : index
    %49 = vector.load %arg10[%c0_26, %c0_27] : memref<8x128xf32, #tpu.memory_space<vmem>>, vector<8x128xf32>
    tpu.vector_store %arg10[%c0_26, %c0_27], %48 {strides = array<i32>} : memref<8x128xf32, #tpu.memory_space<vmem>>, vector<8x128xf32>,
    return
  }
  func.func @transform_0(%arg0: i32) -> (i32, i32) {
    %c0_i32 = arith.constant 0 : i32
    %c0_i32_0 = arith.constant 0 : i32
    return %arg0, %c0_i32 : i32, i32
  }
  func.func @transform_1(%arg0: i32) -> (i32, i32) {
    %c0_i32 = arith.constant 0 : i32
    %c0_i32_0 = arith.constant 0 : i32
    %c0_i32_1 = arith.constant 0 : i32
    return %c0_i32, %c0_i32_0 : i32, i32
  }
  func.func @transform_2(%arg0: i32) -> (i32, i32) {
    %c0_i32 = arith.constant 0 : i32
    %c0_i32_0 = arith.constant 0 : i32
    %c0_i32_1 = arith.constant 0 : i32
    return %c0_i32, %c0_i32_0 : i32, i32
  }
  func.func @transform_3(%arg0: i32) -> (i32, i32) {
    %c0_i32 = arith.constant 0 : i32
    %c0_i32_0 = arith.constant 0 : i32
    %c0_i32_1 = arith.constant 0 : i32
    return %c0_i32, %c0_i32_0 : i32, i32
  }
  func.func @transform_4(%arg0: i32) -> (i32, i32) {
    %c0_i32 = arith.constant 0 : i32
    %c0_i32_0 = arith.constant 0 : i32
    %c0_i32_1 = arith.constant 0 : i32
    return %c0_i32, %c0_i32_0 : i32, i32
  }
  func.func @transform_5(%arg0: i32) -> (i32, i32) {
    %c0_i32 = arith.constant 0 : i32
    %c0_i32_0 = arith.constant 0 : i32
    %c0_i32_1 = arith.constant 0 : i32
    return %c0_i32, %c0_i32_0 : i32, i32
  }
  func.func @transform_6(%arg0: i32) -> (i32, i32) {
    %c0_i32 = arith.constant 0 : i32
    %c0_i32_0 = arith.constant 0 : i32
    %c0_i32_1 = arith.constant 0 : i32
    return %c0_i32, %c0_i32_0 : i32, i32
  }
  func.func @transform_7(%arg0: i32) -> (i32, i32) {
    %c0_i32 = arith.constant 0 : i32
    %c0_i32_0 = arith.constant 0 : i32
    %c0_i32_1 = arith.constant 0 : i32
    return %c0_i32, %c0_i32_0 : i32, i32
  }
  func.func @transform_8(%arg0: i32) -> (i32, i32) {
    %c0_i32 = arith.constant 0 : i32
    %c0_i32_0 = arith.constant 0 : i32
    %c0_i32_1 = arith.constant 0 : i32
    return %c0_i32, %c0_i32_0 : i32, i32
  }
  func.func @transform_9(%arg0: i32) -> (i32, i32) {
    %c0_i32 = arith.constant 0 : i32
    %c0_i32_0 = arith.constant 0 : i32
    return %arg0, %c0_i32 : i32, i32
  }
}

</mosaic_0001>

<llo_original>
// kernel: tpu_custom_call.1
$region0: #{tpu_custom_call.1}
  #allocation0 [shape = 'u32[]', space=smem, size = 0x4, offset = 0x4, fixed_abs, tag = 'smem constant byte address 0x4 - core index']
  #allocation1 [shape = 'u32[144,128]{1,0:T(1,128)}', space=vmem, size = 0x12000, scoped, tag = 'internal scratch']
  %s0 = inlined_call_operand.hbm [shape: f32[8,32], index: 0, kind: input, shape index: {}]
  %s1 = inlined_call_operand.vmem [shape: bf16[32,64], index: 1, kind: input, shape index: {}]
  %s2 = inlined_call_operand.vmem [shape: f32[1,64], index: 2, kind: input, shape index: {}]
  %s3 = inlined_call_operand.vmem [shape: bf16[64,64], index: 3, kind: input, shape index: {}]
  %s4 = inlined_call_operand.vmem [shape: f32[1,64], index: 4, kind: input, shape index: {}]
  %s5 = inlined_call_operand.vmem [shape: bf16[64,32], index: 5, kind: input, shape index: {}]
  %s6 = inlined_call_operand.vmem [shape: f32[1,32], index: 6, kind: input, shape index: {}]
  %s7 = inlined_call_operand.hbm [shape: bf16[32,128], index: 7, kind: input, shape index: {}]
  %s8 = inlined_call_operand.vmem [shape: f32[1,128], index: 8, kind: input, shape index: {}]
  %s9 = inlined_call_operand.hbm [shape: f32[8,128], index: 9, kind: output, shape index: {}]
  %s10 = sld [smem:[#allocation0]]
  $region54: #{tpu_custom_call.1} parent=0
    _
  %s12 = ssub.s32 1, %s10
  %s13 = scalar_select 0, %s12, %s10
  $region1: #{tpu_custom_call.1} parent=0
    #allocation2 [shape = 'u8[4096]{0}', space=vmem, size = 0x1000, scoped, tag = 'input window, operand 0, single buffered']
    #allocation3 [shape = 's32[1]{0}', space=sflag, size = 0x4, scoped, tag = 'scoped memory for tpu_custom_call.1']
    #allocation4 [shape = 's32[1]{0}', space=sflag, size = 0x4, scoped, tag = 'scoped memory for tpu_custom_call.1']
    #allocation5 [shape = 'u8[8192]{0}', space=vmem, size = 0x2000, scoped, tag = 'input window, operand 7, single buffered']
    #allocation6 [shape = 's32[1]{0}', space=sflag, size = 0x4, scoped, tag = 'scoped memory for tpu_custom_call.1']
    #allocation7 [shape = 'u8[4096]{0}', space=vmem, size = 0x1000, scoped, tag = 'output window, operand 0, single buffered']
    %14 = vsyncpa [#allocation3], 0
    %15 = vsyncpa [#allocation6], 0
    %16 = vsyncpa [#allocation4], 0
    // Predicated region
    $region2: #{tpu_custom_call.1} parent=1 // pred_check
      _
    $region3: #{tpu_custom_call.1} parent=1 // pred_check_branch
      %18 = sbr.rel (0) target = $region5
    $region4: #{tpu_custom_call.1} parent=1 // pred_region
      %s20 = ssub.s32 128, 128
      %21 = vsyncadd [#allocation3], %s20
      %s23 = sshll.u32 [#allocation2], 4
      %s24 = int_to_ptr.vmem [resolvable:$true] %s23
      %26 = dma.hbm_to_vmem [thread:$0]  %s0, 128, %s24, [#allocation3]
    $region5: #{tpu_custom_call.1} parent=1 // pred_fallthru
      _
    // Predicated region
    $region6: #{tpu_custom_call.1} parent=1 // pred_check
      _
    $region7: #{tpu_custom_call.1} parent=1 // pred_check_branch
      %28 = sbr.rel (0) target = $region9
    $region8: #{tpu_custom_call.1} parent=1 // pred_region
      _
    $region9: #{tpu_custom_call.1} parent=1 // pred_fallthru
      _
    // Predicated region
    $region10: #{tpu_custom_call.1} parent=1 // pred_check
      _
    $region11: #{tpu_custom_call.1} parent=1 // pred_check_branch
      %30 = sbr.rel (0) target = $region13
    $region12: #{tpu_custom_call.1} parent=1 // pred_region
      _
    $region13: #{tpu_custom_call.1} parent=1 // pred_fallthru
      _
    // Predicated region
    $region14: #{tpu_custom_call.1} parent=1 // pred_check
      _
    $region15: #{tpu_custom_call.1} parent=1 // pred_check_branch
      %32 = sbr.rel (0) target = $region17
    $region16: #{tpu_custom_call.1} parent=1 // pred_region
      _
    $region17: #{tpu_custom_call.1} parent=1 // pred_fallthru
      _
    // Predicated region
    $region18: #{tpu_custom_call.1} parent=1 // pred_check
      _
    $region19: #{tpu_custom_call.1} parent=1 // pred_check_branch
      %34 = sbr.rel (0) target = $region21
    $region20: #{tpu_custom_call.1} parent=1 // pred_region
      _
    $region21: #{tpu_custom_call.1} parent=1 // pred_fallthru
      _
    // Predicated region
    $region22: #{tpu_custom_call.1} parent=1 // pred_check
      _
    $region23: #{tpu_custom_call.1} parent=1 // pred_check_branch
      %36 = sbr.rel (0) target = $region25
    $region24: #{tpu_custom_call.1} parent=1 // pred_region
      _
    $region25: #{tpu_custom_call.1} parent=1 // pred_fallthru
      _
    // Predicated region
    $region26: #{tpu_custom_call.1} parent=1 // pred_check
      _
    $region27: #{tpu_custom_call.1} parent=1 // pred_check_branch
      %38 = sbr.rel (0) target = $region29
    $region28: #{tpu_custom_call.1} parent=1 // pred_region
      _
    $region29: #{tpu_custom_call.1} parent=1 // pred_fallthru
      _
    // Predicated region
    $region30: #{tpu_custom_call.1} parent=1 // pred_check
      _
    $region31: #{tpu_custom_call.1} parent=1 // pred_check_branch
      %40 = sbr.rel (0) target = $region33
    $region32: #{tpu_custom_call.1} parent=1 // pred_region
      %s42 = ssub.s32 256, 256
      %43 = vsyncadd [#allocation6], %s42
      %s44 = sshll.u32 [#allocation5], 4
      %s45 = int_to_ptr.vmem [resolvable:$true] %s44
      %50 = dma.hbm_to_vmem [thread:$0]  %s7, 256, %s45, [#allocation6], 64, 64, 4
    $region33: #{tpu_custom_call.1} parent=1 // pred_fallthru
      _
    // Predicated region
    $region34: #{tpu_custom_call.1} parent=1 // pred_check
      _
    $region35: #{tpu_custom_call.1} parent=1 // pred_check_branch
      %52 = sbr.rel (0) target = $region37
    $region36: #{tpu_custom_call.1} parent=1 // pred_region
      _
    $region37: #{tpu_custom_call.1} parent=1 // pred_fallthru
      _
    // Predicated region
    $region38: #{tpu_custom_call.1} parent=1 // pred_check
      _
    $region39: #{tpu_custom_call.1} parent=1 // pred_check_branch
      %54 = sbr.rel (0) target = $region41
    $region40: #{tpu_custom_call.1} parent=1 // pred_region
      %55 = dma.done [#allocation3], 128
    $region41: #{tpu_custom_call.1} parent=1 // pred_fallthru
      _
    // Predicated region
    $region42: #{tpu_custom_call.1} parent=1 // pred_check
      _
    $region43: #{tpu_custom_call.1} parent=1 // pred_check_branch
      %57 = sbr.rel (0) target = $region45
    $region44: #{tpu_custom_call.1} parent=1 // pred_region
      %58 = dma.done [#allocation6], 256
    $region45: #{tpu_custom_call.1} parent=1 // pred_fallthru
      _
    %v60 = vld [vmem:[#allocation2] sm:$0xff]
    %v61 = vpack.c.bf16 %v60, %v60
    %v62 = vld [vmem:[%s1] sm:$0xf]
    %v63 = vld [vmem:[%s1 + $0x4] sm:$0xf]
    %v64 = vld [vmem:[%s1 + $0x8] sm:$0xf]
    %v65 = vld [vmem:[%s1 + $0xc] sm:$0xf]
    %v66 = vld [vmem:[%s2] sm:$0x1]
    %v68 = vlaneseq
    %v69 = vshrl.u32 %v68, 7
    %v70 = vsub.s32 0, %v69
    %v71 = vrot.slane %v66, %v70
    %v77 = vunpack.c.l.b16 %v62
    %v78 = vunpack.c.l.b16 %v63
    %v79 = vunpack.c.l.b16 %v64
    %v80 = vunpack.c.l.b16 %v65
    %v81 = vpack.c.b16 %v78, %v77
    %v82 = vpack.c.b16 %v80, %v79
    %vm85 = vcmask 261120
    %v87 = vsel %vm85, %v61, 0
    %89 = vmatprep.subr.bf16.mxu0 0
    %90 = vmatpush1.bf16.msra.mxu0 %v81
    %91 = vmatprep.subr.bf16.mxu0 0
    %92 = vmatpush1.bf16.msra.mxu0 %v82
    %93 = vmatprep.subr.bf16.mxu0 0
    %94 = vmatpush1.bf16.msra.mxu0 0
    %95 = vmatprep.subr.bf16.mxu0 0
    %96 = vmatpush1.bf16.msra.mxu0 0
    %97 = vmatprep.subr.bf16.mxu0 0
    %98 = vmatpush1.bf16.msra.mxu0 0
    %99 = vmatprep.subr.bf16.mxu0 0
    %100 = vmatpush1.bf16.msra.mxu0 0
    %101 = vmatprep.subr.bf16.mxu0 0
    %102 = vmatpush1.bf16.msra.mxu0 0
    %103 = vmatprep.subr.bf16.mxu0 0
    %104 = vmatpush1.bf16.msra.mxu0 0
    %105 = vmatprep.subr.bf16.mxu0 0
    %106 = vmatpush1.bf16.msra.mxu0 0
    %107 = vmatprep.subr.bf16.mxu0 0
    %108 = vmatpush1.bf16.msra.mxu0 0
    %109 = vmatprep.subr.bf16.mxu0 0
    %110 = vmatpush1.bf16.msra.mxu0 0
    %111 = vmatprep.subr.bf16.mxu0 0
    %112 = vmatpush1.bf16.msra.mxu0 0
    %113 = vmatprep.subr.bf16.mxu0 0
    %114 = vmatpush1.bf16.msra.mxu0 0
    %115 = vmatprep.subr.bf16.mxu0 0
    %116 = vmatpush1.bf16.msra.mxu0 0
    %117 = vmatprep.subr.bf16.mxu0 0
    %118 = vmatpush1.bf16.msra.mxu0 0
    %119 = vmatprep.subr.bf16.mxu0 0
    %120 = vmatpush1.bf16.msra.mxu0 0
    %121 = vmatprep.mubr.bf16.mxu0 0
    %122 = vmatmul.mubr.bf16.gmra.mrb[0].mxu0 %v87
    %v123 = vpop.f32.mrb[0].mxu0
    %v124 = vadd.f32 %v71, %v123
    %v125 = vpop.f32.mrb[0].mxu0
    %v126 = vpop.f32.mrb[0].mxu0
    %v127 = vpop.f32.mrb[0].mxu0
    %128 = vdwg.mxu0
    %v129 = vmax.f32 %v124, 0.0
    %v130 = vpack.c.bf16 %v129, %v129
    %v131 = vld [vmem:[%s3] sm:$0xf]
    %v132 = vld [vmem:[%s3 + $0x4] sm:$0xf]
    %v133 = vld [vmem:[%s3 + $0x8] sm:$0xf]
    %v134 = vld [vmem:[%s3 + $0xc] sm:$0xf]
    %v135 = vld [vmem:[%s3 + $0x10] sm:$0xf]
    %v136 = vld [vmem:[%s3 + $0x14] sm:$0xf]
    %v137 = vld [vmem:[%s3 + $0x18] sm:$0xf]
    %v138 = vld [vmem:[%s3 + $0x1c] sm:$0xf]
    %v139 = vld [vmem:[%s4] sm:$0x1]
    %v141 = vlaneseq
    %v142 = vshrl.u32 %v141, 7
    %v143 = vsub.s32 0, %v142
    %v144 = vrot.slane %v139, %v143
    %v154 = vunpack.c.l.b16 %v131
    %v155 = vunpack.c.l.b16 %v132
    %v156 = vunpack.c.l.b16 %v133
    %v157 = vunpack.c.l.b16 %v134
    %v158 = vunpack.c.l.b16 %v135
    %v159 = vunpack.c.l.b16 %v136
    %v160 = vunpack.c.l.b16 %v137
    %v161 = vunpack.c.l.b16 %v138
    %v162 = vpack.c.b16 %v155, %v154
    %v163 = vpack.c.b16 %v157, %v156
    %v164 = vpack.c.b16 %v159, %v158
    %v165 = vpack.c.b16 %v161, %v160
    %vm170 = vcmask 523264
    %v172 = vsel %vm170, %v130, 0
    %174 = vmatprep.subr.bf16.mxu0 0
    %175 = vmatpush1.bf16.msra.mxu0 %v162
    %176 = vmatprep.subr.bf16.mxu0 0
    %177 = vmatpush1.bf16.msra.mxu0 %v163
    %178 = vmatprep.subr.bf16.mxu0 0
    %179 = vmatpush1.bf16.msra.mxu0 %v164
    %180 = vmatprep.subr.bf16.mxu0 0
    %181 = vmatpush1.bf16.msra.mxu0 %v165
    %182 = vmatprep.subr.bf16.mxu0 0
    %183 = vmatpush1.bf16.msra.mxu0 0
    %184 = vmatprep.subr.bf16.mxu0 0
    %185 = vmatpush1.bf16.msra.mxu0 0
    %186 = vmatprep.subr.bf16.mxu0 0
    %187 = vmatpush1.bf16.msra.mxu0 0
    %188 = vmatprep.subr.bf16.mxu0 0
    %189 = vmatpush1.bf16.msra.mxu0 0
    %190 = vmatprep.subr.bf16.mxu0 0
    %191 = vmatpush1.bf16.msra.mxu0 0
    %192 = vmatprep.subr.bf16.mxu0 0
    %193 = vmatpush1.bf16.msra.mxu0 0
    %194 = vmatprep.subr.bf16.mxu0 0
    %195 = vmatpush1.bf16.msra.mxu0 0
    %196 = vmatprep.subr.bf16.mxu0 0
    %197 = vmatpush1.bf16.msra.mxu0 0
    %198 = vmatprep.subr.bf16.mxu0 0
    %199 = vmatpush1.bf16.msra.mxu0 0
    %200 = vmatprep.subr.bf16.mxu0 0
    %201 = vmatpush1.bf16.msra.mxu0 0
    %202 = vmatprep.subr.bf16.mxu0 0
    %203 = vmatpush1.bf16.msra.mxu0 0
    %204 = vmatprep.subr.bf16.mxu0 0
    %205 = vmatpush1.bf16.msra.mxu0 0
    %206 = vmatprep.mubr.bf16.mxu0 0
    %207 = vmatmul.mubr.bf16.gmra.mrb[0].mxu0 %v172
    %v208 = vpop.f32.mrb[0].mxu0
    %v209 = vadd.f32 %v144, %v208
    %v210 = vpop.f32.mrb[0].mxu0
    %v211 = vpop.f32.mrb[0].mxu0
    %v212 = vpop.f32.mrb[0].mxu0
    %213 = vdwg.mxu0
    %v214 = vtanh.pop %v209
    %v215 = vpack.c.bf16 %v214, %v214
    %v216 = vld [vmem:[%s5] sm:$0xf]
    %v217 = vld [vmem:[%s5 + $0x4] sm:$0xf]
    %v218 = vld [vmem:[%s5 + $0x8] sm:$0xf]
    %v219 = vld [vmem:[%s5 + $0xc] sm:$0xf]
    %v220 = vld [vmem:[%s5 + $0x10] sm:$0xf]
    %v221 = vld [vmem:[%s5 + $0x14] sm:$0xf]
    %v222 = vld [vmem:[%s5 + $0x18] sm:$0xf]
    %v223 = vld [vmem:[%s5 + $0x1c] sm:$0xf]
    %v224 = vld [vmem:[%s6] sm:$0x1]
    %v226 = vlaneseq
    %v227 = vshrl.u32 %v226, 7
    %v228 = vsub.s32 0, %v227
    %v229 = vrot.slane %v224, %v228
    %v239 = vunpack.c.l.b16 %v216
    %v240 = vunpack.c.l.b16 %v217
    %v241 = vunpack.c.l.b16 %v218
    %v242 = vunpack.c.l.b16 %v219
    %v243 = vunpack.c.l.b16 %v220
    %v244 = vunpack.c.l.b16 %v221
    %v245 = vunpack.c.l.b16 %v222
    %v246 = vunpack.c.l.b16 %v223
    %v247 = vpack.c.b16 %v240, %v239
    %v248 = vpack.c.b16 %v242, %v241
    %v249 = vpack.c.b16 %v244, %v243
    %v250 = vpack.c.b16 %v246, %v245
    %v256 = vsel %vm170, %v215, 0
    %258 = vmatprep.subr.bf16.mxu0 0
    %259 = vmatpush1.bf16.msra.mxu0 %v247
    %260 = vmatprep.subr.bf16.mxu0 0
    %261 = vmatpush1.bf16.msra.mxu0 %v248
    %262 = vmatprep.subr.bf16.mxu0 0
    %263 = vmatpush1.bf16.msra.mxu0 %v249
    %264 = vmatprep.subr.bf16.mxu0 0
    %265 = vmatpush1.bf16.msra.mxu0 %v250
    %266 = vmatprep.subr.bf16.mxu0 0
    %267 = vmatpush1.bf16.msra.mxu0 0
    %268 = vmatprep.subr.bf16.mxu0 0
    %269 = vmatpush1.bf16.msra.mxu0 0
    %270 = vmatprep.subr.bf16.mxu0 0
    %271 = vmatpush1.bf16.msra.mxu0 0
    %272 = vmatprep.subr.bf16.mxu0 0
    %273 = vmatpush1.bf16.msra.mxu0 0
    %274 = vmatprep.subr.bf16.mxu0 0
    %275 = vmatpush1.bf16.msra.mxu0 0
    %276 = vmatprep.subr.bf16.mxu0 0
    %277 = vmatpush1.bf16.msra.mxu0 0
    %278 = vmatprep.subr.bf16.mxu0 0
    %279 = vmatpush1.bf16.msra.mxu0 0
    %280 = vmatprep.subr.bf16.mxu0 0
    %281 = vmatpush1.bf16.msra.mxu0 0
    %282 = vmatprep.subr.bf16.mxu0 0
    %283 = vmatpush1.bf16.msra.mxu0 0
    %284 = vmatprep.subr.bf16.mxu0 0
    %285 = vmatpush1.bf16.msra.mxu0 0
    %286 = vmatprep.subr.bf16.mxu0 0
    %287 = vmatpush1.bf16.msra.mxu0 0
    %288 = vmatprep.subr.bf16.mxu0 0
    %289 = vmatpush1.bf16.msra.mxu0 0
    %290 = vmatprep.mubr.bf16.mxu0 0
    %291 = vmatmul.mubr.bf16.gmra.mrb[0].mxu0 %v256
    %v292 = vpop.f32.mrb[0].mxu0
    %v293 = vadd.f32 %v229, %v292
    %v294 = vpop.f32.mrb[0].mxu0
    %v295 = vpop.f32.mrb[0].mxu0
    %v296 = vpop.f32.mrb[0].mxu0
    %297 = vdwg.mxu0
    %v298 = vsub.f32 0.0, %v293
    %v299 = vmul.f32 %v298, 1.442695
    %v300 = vpow.pop %v299
    %v301 = vadd.f32 %v300, 1.0
    %v302 = vrcp.pop %v301
    %v303 = vpack.c.bf16 %v302, %v302
    %v304 = vld [vmem:[#allocation5] sm:$0xf]
    %v305 = vld [vmem:[#allocation5 + $0x4] sm:$0xf]
    %v306 = vld [vmem:[#allocation5 + $0x8] sm:$0xf]
    %v307 = vld [vmem:[#allocation5 + $0xc] sm:$0xf]
    %v308 = vld [vmem:[%s8] sm:$0x1]
    %v310 = vlaneseq
    %v311 = vshrl.u32 %v310, 7
    %v312 = vsub.s32 0, %v311
    %v313 = vrot.slane %v308, %v312
    %v319 = vunpack.c.l.b16 %v304
    %v320 = vunpack.c.l.b16 %v305
    %v321 = vunpack.c.l.b16 %v306
    %v322 = vunpack.c.l.b16 %v307
    %v323 = vpack.c.b16 %v320, %v319
    %v324 = vpack.c.b16 %v322, %v321
    %v328 = vsel %vm85, %v303, 0
    %330 = vmatprep.subr.bf16.mxu0 0
    %331 = vmatpush1.bf16.msra.mxu0 %v323
    %332 = vmatprep.subr.bf16.mxu0 0
    %333 = vmatpush1.bf16.msra.mxu0 %v324
    %334 = vmatprep.subr.bf16.mxu0 0
    %335 = vmatpush1.bf16.msra.mxu0 0
    %336 = vmatprep.subr.bf16.mxu0 0
    %337 = vmatpush1.bf16.msra.mxu0 0
    %338 = vmatprep.subr.bf16.mxu0 0
    %339 = vmatpush1.bf16.msra.mxu0 0
    %340 = vmatprep.subr.bf16.mxu0 0
    %341 = vmatpush1.bf16.msra.mxu0 0
    %342 = vmatprep.subr.bf16.mxu0 0
    %343 = vmatpush1.bf16.msra.mxu0 0
    %344 = vmatprep.subr.bf16.mxu0 0
    %345 = vmatpush1.bf16.msra.mxu0 0
    %346 = vmatprep.subr.bf16.mxu0 0
    %347 = vmatpush1.bf16.msra.mxu0 0
    %348 = vmatprep.subr.bf16.mxu0 0
    %349 = vmatpush1.bf16.msra.mxu0 0
    %350 = vmatprep.subr.bf16.mxu0 0
    %351 = vmatpush1.bf16.msra.mxu0 0
    %352 = vmatprep.subr.bf16.mxu0 0
    %353 = vmatpush1.bf16.msra.mxu0 0
    %354 = vmatprep.subr.bf16.mxu0 0
    %355 = vmatpush1.bf16.msra.mxu0 0
    %356 = vmatprep.subr.bf16.mxu0 0
    %357 = vmatpush1.bf16.msra.mxu0 0
    %358 = vmatprep.subr.bf16.mxu0 0
    %359 = vmatpush1.bf16.msra.mxu0 0
    %360 = vmatprep.subr.bf16.mxu0 0
    %361 = vmatpush1.bf16.msra.mxu0 0
    %362 = vmatprep.mubr.bf16.mxu0 0
    %363 = vmatmul.mubr.bf16.gmra.mrb[0].mxu0 %v328
    %v364 = vpop.f32.mrb[0].mxu0
    %v365 = vadd.f32 %v313, %v364
    %v366 = vpop.f32.mrb[0].mxu0
    %v367 = vpop.f32.mrb[0].mxu0
    %v368 = vpop.f32.mrb[0].mxu0
    %369 = vdwg.mxu0
    %v370 = vlaneseq
    %v371 = vand.u32 %v370, 127
    %vm372 = vcmp.lt.s32.totalorder %v371, 16
    %v373 = vsel %vm372, %v365, -inf
    %374 = vmax.xlane.f32.xlu0 %v373
    %v375 = vpop.xlane.xlu0 %374
    %v376 = vsub.f32 %v373, %v375
    %v377 = vmul.f32 %v376, 1.442695
    %v378 = vpow.pop %v377
    %379 = vadd.xlane.f32.xlu0 %v378
    %v380 = vpop.xlane.xlu0 %379
    %v381 = vrcp.pop %v380
    %v382 = vmul.f32 %v378, %v381
    %383 = vst [vmem:[#allocation7] sm:$0xff] %v382
    // Predicated region
    $region46: #{tpu_custom_call.1} parent=1 // pred_check
      _
    $region47: #{tpu_custom_call.1} parent=1 // pred_check_branch
      %385 = sbr.rel (0) target = $region49
    $region48: #{tpu_custom_call.1} parent=1 // pred_region
      %s387 = ssub.s32 128, 128
      %388 = vsyncadd [#allocation4], %s387
      %s390 = sshll.u32 [#allocation7], 4
      %s391 = int_to_ptr.vmem [resolvable:$true] %s390
      %393 = dma.vmem_to_hbm [thread:$0]  %s391, 128, %s9, [#allocation4]
    $region49: #{tpu_custom_call.1} parent=1 // pred_fallthru
      _
    // Predicated region
    $region50: #{tpu_custom_call.1} parent=1 // pred_check
      _
    $region51: #{tpu_custom_call.1} parent=1 // pred_check_branch
      %395 = sbr.rel (0) target = $region53
    $region52: #{tpu_custom_call.1} parent=1 // pred_region
      %396 = dma.done [#allocation4], 128
    $region53: #{tpu_custom_call.1} parent=1 // pred_fallthru
      _
    %397 = vsyncpa [#allocation3], 1
    %398 = vsyncpa [#allocation6], 1
    %399 = vsyncpa [#allocation4], 1

</llo_original>
